<compile_context>
chip_gen: v7x
topology: tpu7x:2x2x1
jax: 0.10.0
libtpu: 0.0.40
codegen_flags: <defaults>
</compile_context>

<pallas_src>
import jax
import jax.numpy as jnp
from jax.experimental import pallas as pl
from jax.experimental.pallas import tpu as pltpu


def _round_up(x, m):
    return (x + m - 1) // m * m


def _cloud_impact_kernel(coef_ref,        # SMEM (5,) f32: a, b, c, d, e
                         cf_ref,          # VMEM (TB, GG) f32   cloudFraction
                         cc_ref,          # VMEM (TB, GG) int32 cloudClass
                         h2_ref,          # VMEM (TB, 8)  f32   MLP bottleneck
                         w3_ref, b3_ref,  # VMEM (8, GG), (1, GG) f32
                         out_ref):        # VMEM (TB, GG) f32
    cf = cf_ref[...]
    cc = cc_ref[...]

    a = coef_ref[0]
    b = coef_ref[1]
    c = coef_ref[2]
    d = coef_ref[3]
    e = coef_ref[4]
    zero = jnp.float32(0.0)

    # Fused class-indicator weighting: one select chain + one multiply (VPU).
    coef_map = jnp.where(cc == 0, a,
               jnp.where(cc == 1, b,
               jnp.where(cc == 2, c,
               jnp.where(cc == 3, d,
               jnp.where(cc == 4, e, zero)))))
    cloud = jnp.maximum(jnp.tanh(cf * coef_map), zero)        # reth = relu(tanh(.))

    # Rank-8 expansion to the grid on the (otherwise idle) MXU, f32 accumulate.
    acc = jnp.dot(h2_ref[...], w3_ref[...],
                  preferred_element_type=jnp.float32) + b3_ref[...]
    sp = jax.nn.sigmoid(acc)                                   # (TB, GG)

    out_ref[...] = cloud * sp


def cloud_impact_forward(params, cloud_fraction, cloud_class, sza, saa, *, block_b=None):
    """Forward pass of CloudImpactNNnoSP.

    cloud_fraction : (B, GG) float32
    cloud_class    : (B, GG) integer classes in {0..4}
    sza, saa       : (B, 1) float32
    """
    B, GG = cloud_fraction.shape

    cf = cloud_fraction.astype(jnp.float32)
    cc = cloud_class.astype(jnp.int32)          # no-op when already int32

    # Tiny solar-position front-end: Linear(2,4)-Sigmoid-Linear(4,8)-Sigmoid.
    # O(B*8) work; done once here so the kernel only needs the (B, 8) bottleneck.
    hi = jax.lax.Precision.HIGHEST
    x = jnp.concatenate([sza.astype(jnp.float32), saa.astype(jnp.float32)], axis=1)
    h1 = jax.nn.sigmoid(jnp.dot(x, params["w1"], precision=hi) + params["b1"])
    h2 = jax.nn.sigmoid(jnp.dot(h1, params["w2"], precision=hi) + params["b2"])  # (B, 8)

    if block_b is None:
        # Explicit VMEM budget (fits v7x's 64 MiB physical VMEM with headroom):
        #   streamed + double-buffered:  cf + cc + out  -> 2 * 12 B per element
        #   live f32 temporaries (coef_map, cloud, acc, sp) -> ~16 B per element
        #   resident, double-buffered weights: 2 * (w3 + b3)
        weight_bytes = 2 * (8 + 1) * GG * 4
        budget = (40 << 20) - weight_bytes
        per_row = GG * (2 * 12 + 16)
        cap = max(8, min(1024, budget // max(per_row, 1) // 8 * 8))
        if B >= 16:
            # v7x: keep >= 2 grid steps so both TensorCores get work.
            cap = min(cap, max(8, _round_up(pl.cdiv(B, 2), 8)))
        block_b = min(cap, _round_up(B, 8))
    TB = max(8, block_b)

    tiled = lambda i: (i, 0)
    const = lambda i: (0, 0)

    out = pl.pallas_call(
        _cloud_impact_kernel,
        out_shape=jax.ShapeDtypeStruct((B, GG), jnp.float32),
        grid=(pl.cdiv(B, TB),),
        in_specs=[
            pl.BlockSpec(memory_space=pltpu.MemorySpace.SMEM),  # coef a..e
            pl.BlockSpec((TB, GG), tiled),                      # cloudFraction
            pl.BlockSpec((TB, GG), tiled),                      # cloudClass (int32)
            pl.BlockSpec((TB, 8), tiled),                       # MLP bottleneck h2
            pl.BlockSpec((8, GG), const),                       # w3 (resident)
            pl.BlockSpec((1, GG), const),                       # b3 (resident)
        ],
        out_specs=pl.BlockSpec((TB, GG), tiled),
        compiler_params=pltpu.CompilerParams(
            dimension_semantics=("parallel",),
            vmem_limit_bytes=64 << 20),
    )(params["coef"], cf, cc, h2, params["w3"], params["b3"])

    return out


def _reference(params, cloud_fraction, cloud_class, sza, saa):
    hi = jax.lax.Precision.HIGHEST
    coef = params["coef"]
    cf = cloud_fraction.astype(jnp.float32)
    cc = cloud_class
    cloud = sum(coef[k] * cf * (cc == k).astype(jnp.float32) for k in range(5))
    cloud = jnp.maximum(jnp.tanh(cloud), 0.0)
    x = jnp.concatenate([sza, saa], axis=1).astype(jnp.float32)
    h = jax.nn.sigmoid(jnp.dot(x, params["w1"], precision=hi) + params["b1"])
    h = jax.nn.sigmoid(jnp.dot(h, params["w2"], precision=hi) + params["b2"])
    sp = jax.nn.sigmoid(jnp.dot(h, params["w3"], precision=hi) + params["b3"])
    return cloud * sp


def init_params(key, grid_size):
    gg = grid_size * grid_size
    k1, k2, k3 = jax.random.split(key, 3)
    return {
        "coef": jnp.array([0.1, 0.5, 0.9, 0.8, 0.3], dtype=jnp.float32),
        "w1": jax.random.normal(k1, (2, 4), jnp.float32) * 0.5,
        "b1": jnp.zeros((1, 4), jnp.float32),
        "w2": jax.random.normal(k2, (4, 8), jnp.float32) * 0.5,
        "b2": jnp.zeros((1, 8), jnp.float32),
        "w3": jax.random.normal(k3, (8, gg), jnp.float32) * 0.5,
        "b3": jnp.zeros((1, gg), jnp.float32),
    }


if __name__ == "__main__":
    grid_size = 8
    gg = grid_size * grid_size
    batch = 8

    key = jax.random.PRNGKey(0)
    kp, kcf, kcc, ksza, ksaa = jax.random.split(key, 5)

    params = init_params(kp, grid_size)
    cloud_fraction = jax.random.uniform(kcf, (batch, gg), jnp.float32)
    cloud_class = jax.random.randint(kcc, (batch, gg), 0, 5, dtype=jnp.int32)
    sza = jax.random.uniform(ksza, (batch, 1), jnp.float32)
    saa = jax.random.uniform(ksaa, (batch, 1), jnp.float32)

    out = cloud_impact_forward(params, cloud_fraction, cloud_class, sza, saa)
    out = jax.block_until_ready(out)

    ref = _reference(params, cloud_fraction, cloud_class, sza, saa)
    assert out.shape == (batch, gg)
    assert jnp.allclose(out, ref, atol=1e-5, rtol=1e-5), (
        f"mismatch vs reference, max abs err {jnp.max(jnp.abs(out - ref))}")

    print("KERNEL_OK")
</pallas_src>

<mosaic_0001>
module attributes {stable_mosaic.version = 11 : i64} {
  func.func @_cloud_impact_kernel(%arg0: i32, %arg1: memref<5xf32, #tpu.memory_space<smem>>, %arg2: memref<8x64xf32, #tpu.memory_space<vmem>>, %arg3: memref<8x64xi32, #tpu.memory_space<vmem>>, %arg4: memref<8x8xf32, #tpu.memory_space<vmem>>, %arg5: memref<8x64xf32, #tpu.memory_space<vmem>>, %arg6: memref<1x64xf32, #tpu.memory_space<vmem>>, %arg7: memref<8x64xf32, #tpu.memory_space<vmem>>) attributes {dimension_semantics = [#tpu.dimension_semantics<parallel>], iteration_bounds = array<i64: 1>, scalar_prefetch = 0 : i64, scratch_operands = 0 : i64, tpu.core_type = #tpu.core_type<tc>, window_params = [{transform_indices = @transform_0, window_bounds = array<i64: 5>}, {transform_indices = @transform_1, window_bounds = array<i64: 8, 64>}, {transform_indices = @transform_2, window_bounds = array<i64: 8, 64>}, {transform_indices = @transform_3, window_bounds = array<i64: 8, 8>}, {pipeline_mode = #tpu.pipeline_mode<synchronous>, transform_indices = @transform_4, window_bounds = array<i64: 8, 64>}, {pipeline_mode = #tpu.pipeline_mode<synchronous>, transform_indices = @transform_5, window_bounds = array<i64: 1, 64>}, {transform_indices = @transform_6, window_bounds = array<i64: 8, 64>}]} {
    %c0 = arith.constant 0 : index
    %c0_0 = arith.constant 0 : index
    %0 = vector.load %arg2[%c0, %c0_0] : memref<8x64xf32, #tpu.memory_space<vmem>>, vector<8x64xf32>
    %c0_1 = arith.constant 0 : index
    %c0_2 = arith.constant 0 : index
    %1 = vector.load %arg3[%c0_1, %c0_2] : memref<8x64xi32, #tpu.memory_space<vmem>>, vector<8x64xi32>
    %c0_3 = arith.constant 0 : index
    %2 = memref.load %arg1[%c0_3] : memref<5xf32, #tpu.memory_space<smem>>
    %c1 = arith.constant 1 : index
    %3 = memref.load %arg1[%c1] : memref<5xf32, #tpu.memory_space<smem>>
    %c2 = arith.constant 2 : index
    %4 = memref.load %arg1[%c2] : memref<5xf32, #tpu.memory_space<smem>>
    %c3 = arith.constant 3 : index
    %5 = memref.load %arg1[%c3] : memref<5xf32, #tpu.memory_space<smem>>
    %c4 = arith.constant 4 : index
    %6 = memref.load %arg1[%c4] : memref<5xf32, #tpu.memory_space<smem>>
    %c0_i32 = arith.constant 0 : i32
    %7 = vector.broadcast %c0_i32 : i32 to vector<8x64xi32>
    %8 = arith.cmpi eq, %1, %7 : vector<8x64xi32>
    %c1_i32 = arith.constant 1 : i32
    %9 = vector.broadcast %c1_i32 : i32 to vector<8x64xi32>
    %10 = arith.cmpi eq, %1, %9 : vector<8x64xi32>
    %c2_i32 = arith.constant 2 : i32
    %11 = vector.broadcast %c2_i32 : i32 to vector<8x64xi32>
    %12 = arith.cmpi eq, %1, %11 : vector<8x64xi32>
    %c3_i32 = arith.constant 3 : i32
    %13 = vector.broadcast %c3_i32 : i32 to vector<8x64xi32>
    %14 = arith.cmpi eq, %1, %13 : vector<8x64xi32>
    %c4_i32 = arith.constant 4 : i32
    %15 = vector.broadcast %c4_i32 : i32 to vector<8x64xi32>
    %16 = arith.cmpi eq, %1, %15 : vector<8x64xi32>
    %cst = arith.constant 0.000000e+00 : f32
    %17 = vector.broadcast %6 : f32 to vector<8x64xf32>
    %18 = vector.broadcast %cst : f32 to vector<8x64xf32>
    %19 = arith.select %16, %17, %18 : vector<8x64xi1>, vector<8x64xf32>
    %20 = vector.broadcast %5 : f32 to vector<8x64xf32>
    %21 = arith.select %14, %20, %19 : vector<8x64xi1>, vector<8x64xf32>
    %22 = vector.broadcast %4 : f32 to vector<8x64xf32>
    %23 = arith.select %12, %22, %21 : vector<8x64xi1>, vector<8x64xf32>
    %24 = vector.broadcast %3 : f32 to vector<8x64xf32>
    %25 = arith.select %10, %24, %23 : vector<8x64xi1>, vector<8x64xf32>
    %26 = vector.broadcast %2 : f32 to vector<8x64xf32>
    %27 = arith.select %8, %26, %25 : vector<8x64xi1>, vector<8x64xf32>
    %28 = arith.mulf %0, %27 : vector<8x64xf32>
    %29 = math.tanh %28 : vector<8x64xf32>
    %cst_4 = arith.constant 0.000000e+00 : f32
    %30 = vector.broadcast %cst_4 : f32 to vector<8x64xf32>
    %31 = arith.maximumf %29, %30 : vector<8x64xf32>
    %c0_5 = arith.constant 0 : index
    %c0_6 = arith.constant 0 : index
    %32 = vector.load %arg4[%c0_5, %c0_6] : memref<8x8xf32, #tpu.memory_space<vmem>>, vector<8x8xf32>
    %c0_7 = arith.constant 0 : index
    %c0_8 = arith.constant 0 : index
    %33 = vector.load %arg5[%c0_7, %c0_8] : memref<8x64xf32, #tpu.memory_space<vmem>>, vector<8x64xf32>
    %cst_9 = arith.constant dense<0.000000e+00> : vector<8x64xf32>
    %34 = tpu.matmul %32, %33, %cst_9 {dimension_numbers = #tpu.dot_dimension_numbers<[1], [0], [0], [1], [0, 0, 1, 1], [], []>} : vector<8x8xf32>, vector<8x64xf32>, vector<8x64xf32> -> vector<8x64xf32>
    %c0_10 = arith.constant 0 : index
    %c0_11 = arith.constant 0 : index
    %35 = vector.load %arg6[%c0_10, %c0_11] : memref<1x64xf32, #tpu.memory_space<vmem>>, vector<1x64xf32>
    %36 = vector.broadcast %35 : vector<1x64xf32> to vector<8x64xf32>
    %37 = arith.addf %34, %36 : vector<8x64xf32>
    %38 = arith.negf %37 : vector<8x64xf32>
    %39 = math.exp %38 : vector<8x64xf32>
    %cst_12 = arith.constant 1.000000e+00 : f32
    %40 = vector.broadcast %cst_12 : f32 to vector<8x64xf32>
    %41 = arith.addf %40, %39 : vector<8x64xf32>
    %42 = arith.divf %40, %41 : vector<8x64xf32>
    %43 = arith.mulf %31, %42 : vector<8x64xf32>
    %c0_13 = arith.constant 0 : index
    %c0_14 = arith.constant 0 : index
    %44 = vector.load %arg7[%c0_13, %c0_14] : memref<8x64xf32, #tpu.memory_space<vmem>>, vector<8x64xf32>
    tpu.vector_store %arg7[%c0_13, %c0_14], %43 {strides = array<i32>} : memref<8x64xf32, #tpu.memory_space<vmem>>, vector<8x64xf32>,
    return
  }
  func.func @transform_0(%arg0: i32) -> i32 {
    %c0_i32 = arith.constant 0 : i32
    %c0_i32_0 = arith.constant 0 : i32
    return %c0_i32 : i32
  }
  func.func @transform_1(%arg0: i32) -> (i32, i32) {
    %c0_i32 = arith.constant 0 : i32
    %c0_i32_0 = arith.constant 0 : i32
    return %arg0, %c0_i32 : i32, i32
  }
  func.func @transform_2(%arg0: i32) -> (i32, i32) {
    %c0_i32 = arith.constant 0 : i32
    %c0_i32_0 = arith.constant 0 : i32
    return %arg0, %c0_i32 : i32, i32
  }
  func.func @transform_3(%arg0: i32) -> (i32, i32) {
    %c0_i32 = arith.constant 0 : i32
    %c0_i32_0 = arith.constant 0 : i32
    return %arg0, %c0_i32 : i32, i32
  }
  func.func @transform_4(%arg0: i32) -> (i32, i32) {
    %c0_i32 = arith.constant 0 : i32
    %c0_i32_0 = arith.constant 0 : i32
    %c0_i32_1 = arith.constant 0 : i32
    return %c0_i32, %c0_i32_0 : i32, i32
  }
  func.func @transform_5(%arg0: i32) -> (i32, i32) {
    %c0_i32 = arith.constant 0 : i32
    %c0_i32_0 = arith.constant 0 : i32
    %c0_i32_1 = arith.constant 0 : i32
    return %c0_i32, %c0_i32_0 : i32, i32
  }
  func.func @transform_6(%arg0: i32) -> (i32, i32) {
    %c0_i32 = arith.constant 0 : i32
    %c0_i32_0 = arith.constant 0 : i32
    return %arg0, %c0_i32 : i32, i32
  }
}

</mosaic_0001>

<llo_original>
// kernel: tpu_custom_call.1
$region0: #{tpu_custom_call.1}
  #allocation0 [shape = 'u32[]', space=smem, size = 0x4, offset = 0x4, fixed_abs, tag = 'smem constant byte address 0x4 - core index']
  #allocation1 [shape = 'u32[144,128]{1,0:T(1,128)}', space=vmem, size = 0x12000, scoped, tag = 'internal scratch']
  %s0 = inlined_call_operand.hbm [shape: f32[5], index: 0, kind: input, shape index: {}]
  %s1 = inlined_call_operand.hbm [shape: f32[8,64], index: 1, kind: input, shape index: {}]
  %s2 = inlined_call_operand.hbm [shape: s32[8,64], index: 2, kind: input, shape index: {}]
  %s3 = inlined_call_operand.hbm [shape: f32[8,8], index: 3, kind: input, shape index: {}]
  %s4 = inlined_call_operand.hbm [shape: f32[8,64], index: 4, kind: input, shape index: {}]
  %s5 = inlined_call_operand.hbm [shape: f32[1,64], index: 5, kind: input, shape index: {}]
  %s6 = inlined_call_operand.hbm [shape: f32[8,64], index: 6, kind: output, shape index: {}]
  %s7 = sld [smem:[#allocation0]]
  $region58: #{tpu_custom_call.1} parent=0
    _
  %s9 = ssub.s32 1, %s7
  %s10 = scalar_select 0, %s9, %s7
  $region1: #{tpu_custom_call.1} parent=0
    #allocation2 [shape = 'u8[512]{0}', space=smem, size = 0x200, scoped, tag = 'input window, operand 0, single buffered']
    #allocation3 [shape = 's32[1]{0}', space=sflag, size = 0x4, scoped, tag = 'scoped memory for tpu_custom_call.1']
    #allocation4 [shape = 's32[1]{0}', space=sflag, size = 0x4, scoped, tag = 'scoped memory for tpu_custom_call.1']
    #allocation5 [shape = 's32[1]{0}', space=sflag, size = 0x4, scoped, tag = 'scoped memory for tpu_custom_call.1']
    #allocation6 [shape = 'u8[4096]{0}', space=vmem, size = 0x1000, scoped, tag = 'input window, operand 1, single buffered']
    #allocation7 [shape = 'u8[4096]{0}', space=vmem, size = 0x1000, scoped, tag = 'input window, operand 2, single buffered']
    #allocation8 [shape = 's32[1]{0}', space=sflag, size = 0x4, scoped, tag = 'scoped memory for tpu_custom_call.1']
    #allocation9 [shape = 'u8[4096]{0}', space=vmem, size = 0x1000, scoped, tag = 'input window, operand 3, single buffered']
    #allocation10 [shape = 'u8[4096]{0}', space=vmem, size = 0x1000, scoped, tag = 'input window, operand 4, single buffered']
    #allocation11 [shape = 's32[1]{0}', space=sflag, size = 0x4, scoped, tag = 'scoped memory for tpu_custom_call.1']
    #allocation12 [shape = 'u8[512]{0}', space=vmem, size = 0x400, scoped, tag = 'input window, operand 5, single buffered']
    #allocation13 [shape = 'u8[4096]{0}', space=vmem, size = 0x1000, scoped, tag = 'output window, operand 0, single buffered']
    %11 = vsyncpa [#allocation5], 0
    %12 = vsyncpa [#allocation3], 0
    %13 = vsyncpa [#allocation8], 0
    %14 = vsyncpa [#allocation11], 0
    %15 = vsyncpa [#allocation4], 0
    // Predicated region
    $region2: #{tpu_custom_call.1} parent=1 // pred_check
      _
    $region3: #{tpu_custom_call.1} parent=1 // pred_check_branch
      %17 = sbr.rel (0) target = $region5
    $region4: #{tpu_custom_call.1} parent=1 // pred_region
      %s19 = ssub.s32 16, 16
      %20 = vsyncadd [#allocation5], %s19
      %23 = dma.hbm_to_smem %s0, 16, [#allocation2], [#allocation5]
    $region5: #{tpu_custom_call.1} parent=1 // pred_fallthru
      _
    // Predicated region
    $region6: #{tpu_custom_call.1} parent=1 // pred_check
      _
    $region7: #{tpu_custom_call.1} parent=1 // pred_check_branch
      %25 = sbr.rel (0) target = $region9
    $region8: #{tpu_custom_call.1} parent=1 // pred_region
      %s27 = ssub.s32 128, 128
      %28 = vsyncadd [#allocation3], %s27
      %s30 = sshll.u32 [#allocation6], 4
      %s31 = int_to_ptr.vmem [resolvable:$true] %s30
      %33 = dma.hbm_to_vmem [thread:$0]  %s1, 128, %s31, [#allocation3]
    $region9: #{tpu_custom_call.1} parent=1 // pred_fallthru
      _
    // Predicated region
    $region10: #{tpu_custom_call.1} parent=1 // pred_check
      _
    $region11: #{tpu_custom_call.1} parent=1 // pred_check_branch
      %35 = sbr.rel (0) target = $region13
    $region12: #{tpu_custom_call.1} parent=1 // pred_region
      %s37 = ssub.s32 128, 128
      %38 = vsyncadd [#allocation8], %s37
      %s40 = sshll.u32 [#allocation7], 4
      %s41 = int_to_ptr.vmem [resolvable:$true] %s40
      %43 = dma.hbm_to_vmem [thread:$0]  %s2, 128, %s41, [#allocation8]
    $region13: #{tpu_custom_call.1} parent=1 // pred_fallthru
      _
    // Predicated region
    $region14: #{tpu_custom_call.1} parent=1 // pred_check
      _
    $region15: #{tpu_custom_call.1} parent=1 // pred_check_branch
      %45 = sbr.rel (0) target = $region17
    $region16: #{tpu_custom_call.1} parent=1 // pred_region
      %s47 = ssub.s32 128, 128
      %48 = vsyncadd [#allocation8], %s47
      %s50 = sshll.u32 [#allocation9], 4
      %s51 = int_to_ptr.vmem [resolvable:$true] %s50
      %53 = dma.hbm_to_vmem [thread:$0]  %s3, 128, %s51, [#allocation8]
    $region17: #{tpu_custom_call.1} parent=1 // pred_fallthru
      _
    // Predicated region
    $region18: #{tpu_custom_call.1} parent=1 // pred_check
      _
    $region19: #{tpu_custom_call.1} parent=1 // pred_check_branch
      %55 = sbr.rel (0) target = $region21
    $region20: #{tpu_custom_call.1} parent=1 // pred_region
      %s57 = ssub.s32 128, 128
      %58 = vsyncadd [#allocation11], %s57
      %s60 = sshll.u32 [#allocation10], 4
      %s61 = int_to_ptr.vmem [resolvable:$true] %s60
      %63 = dma.hbm_to_vmem [thread:$0]  %s4, 128, %s61, [#allocation11]
    $region21: #{tpu_custom_call.1} parent=1 // pred_fallthru
      _
    // Predicated region
    $region22: #{tpu_custom_call.1} parent=1 // pred_check
      _
    $region23: #{tpu_custom_call.1} parent=1 // pred_check_branch
      %65 = sbr.rel (0) target = $region25
    $region24: #{tpu_custom_call.1} parent=1 // pred_region
      %s67 = ssub.s32 16, 16
      %68 = vsyncadd [#allocation11], %s67
      %s70 = sshll.u32 [#allocation12], 4
      %s71 = int_to_ptr.vmem [resolvable:$true] %s70
      %73 = dma.hbm_to_vmem [thread:$0]  %s5, 16, %s71, [#allocation11]
    $region25: #{tpu_custom_call.1} parent=1 // pred_fallthru
      _
    // Predicated region
    $region26: #{tpu_custom_call.1} parent=1 // pred_check
      _
    $region27: #{tpu_custom_call.1} parent=1 // pred_check_branch
      %75 = sbr.rel (0) target = $region29
    $region28: #{tpu_custom_call.1} parent=1 // pred_region
      %76 = dma.done [#allocation5], 16
    $region29: #{tpu_custom_call.1} parent=1 // pred_fallthru
      _
    // Predicated region
    $region30: #{tpu_custom_call.1} parent=1 // pred_check
      _
    $region31: #{tpu_custom_call.1} parent=1 // pred_check_branch
      %78 = sbr.rel (0) target = $region33
    $region32: #{tpu_custom_call.1} parent=1 // pred_region
      %79 = dma.done [#allocation3], 128
    $region33: #{tpu_custom_call.1} parent=1 // pred_fallthru
      _
    // Predicated region
    $region34: #{tpu_custom_call.1} parent=1 // pred_check
      _
    $region35: #{tpu_custom_call.1} parent=1 // pred_check_branch
      %81 = sbr.rel (0) target = $region37
    $region36: #{tpu_custom_call.1} parent=1 // pred_region
      %82 = dma.done [#allocation8], 128
    $region37: #{tpu_custom_call.1} parent=1 // pred_fallthru
      _
    // Predicated region
    $region38: #{tpu_custom_call.1} parent=1 // pred_check
      _
    $region39: #{tpu_custom_call.1} parent=1 // pred_check_branch
      %84 = sbr.rel (0) target = $region41
    $region40: #{tpu_custom_call.1} parent=1 // pred_region
      %85 = dma.done [#allocation8], 128
    $region41: #{tpu_custom_call.1} parent=1 // pred_fallthru
      _
    // Predicated region
    $region42: #{tpu_custom_call.1} parent=1 // pred_check
      _
    $region43: #{tpu_custom_call.1} parent=1 // pred_check_branch
      %87 = sbr.rel (0) target = $region45
    $region44: #{tpu_custom_call.1} parent=1 // pred_region
      %88 = dma.done [#allocation11], 128
    $region45: #{tpu_custom_call.1} parent=1 // pred_fallthru
      _
    // Predicated region
    $region46: #{tpu_custom_call.1} parent=1 // pred_check
      _
    $region47: #{tpu_custom_call.1} parent=1 // pred_check_branch
      %90 = sbr.rel (0) target = $region49
    $region48: #{tpu_custom_call.1} parent=1 // pred_region
      %91 = dma.done [#allocation11], 16
    $region49: #{tpu_custom_call.1} parent=1 // pred_fallthru
      _
    %92 = sfence
    %v93 = vld [vmem:[#allocation6] sm:$0xff]
    %v94 = vld [vmem:[#allocation7] sm:$0xff]
    %s95 = sld [smem:[#allocation2]]
    %s96 = sld [smem:[#allocation2 + $0x1]]
    %s97 = sld [smem:[#allocation2 + $0x2]]
    %s98 = sld [smem:[#allocation2 + $0x3]]
    %s99 = sld [smem:[#allocation2 + $0x4]]
    %vm100 = vcmp.eq.s32.totalorder %v94, 0
    %vm101 = vcmp.eq.s32.totalorder %v94, 1
    %vm102 = vcmp.eq.s32.totalorder %v94, 2
    %vm103 = vcmp.eq.s32.totalorder %v94, 3
    %vm104 = vcmp.eq.s32.totalorder %v94, 4
    %v105 = vstv %s99
    %v106 = vsel %vm104, %v105, 0.0
    %v107 = vstv %s98
    %v108 = vsel %vm103, %v107, %v106
    %v109 = vstv %s97
    %v110 = vsel %vm102, %v109, %v108
    %v111 = vstv %s96
    %v112 = vsel %vm101, %v111, %v110
    %v113 = vstv %s95
    %v114 = vsel %vm100, %v113, %v112
    %v115 = vmul.f32 %v93, %v114
    %v116 = vtanh.pop %v115
    %v117 = vmax.f32 %v116, 0.0
    %v118 = vld [vmem:[#allocation9] sm:$0xff]
    %v119 = vld [vmem:[#allocation10] sm:$0xff]
    %v120 = vld [vmem:[#allocation12] sm:$0x1]
    %v122 = vlaneseq
    %v123 = vshrl.u32 %v122, 7
    %v124 = vsub.s32 0, %v123
    %v125 = vrot.slane %v120, %v124
    %vm127 = vcmask 64512
    %v129 = vsel %vm127, %v118, 0
    %131 = vmatprep.subr.mxu0 0.0
    %132 = vmatpush1.msra.mxu0 %v119
    %133 = vmatprep.subr.mxu0 0.0
    %134 = vmatpush1.msra.mxu0 0.0
    %135 = vmatprep.subr.mxu0 0.0
    %136 = vmatpush1.msra.mxu0 0.0
    %137 = vmatprep.subr.mxu0 0.0
    %138 = vmatpush1.msra.mxu0 0.0
    %139 = vmatprep.subr.mxu0 0.0
    %140 = vmatpush1.msra.mxu0 0.0
    %141 = vmatprep.subr.mxu0 0.0
    %142 = vmatpush1.msra.mxu0 0.0
    %143 = vmatprep.subr.mxu0 0.0
    %144 = vmatpush1.msra.mxu0 0.0
    %145 = vmatprep.subr.mxu0 0.0
    %146 = vmatpush1.msra.mxu0 0.0
    %147 = vmatprep.subr.mxu0 0.0
    %148 = vmatpush1.msra.mxu0 0.0
    %149 = vmatprep.subr.mxu0 0.0
    %150 = vmatpush1.msra.mxu0 0.0
    %151 = vmatprep.subr.mxu0 0.0
    %152 = vmatpush1.msra.mxu0 0.0
    %153 = vmatprep.subr.mxu0 0.0
    %154 = vmatpush1.msra.mxu0 0.0
    %155 = vmatprep.subr.mxu0 0.0
    %156 = vmatpush1.msra.mxu0 0.0
    %157 = vmatprep.subr.mxu0 0.0
    %158 = vmatpush1.msra.mxu0 0.0
    %159 = vmatprep.subr.mxu0 0.0
    %160 = vmatpush1.msra.mxu0 0.0
    %161 = vmatprep.subr.mxu0 0.0
    %162 = vmatpush1.msra.mxu0 0.0
    %163 = vmatprep.subr.mxu0 0.0
    %164 = vmatpush1.msra.mxu0 0.0
    %165 = vmatprep.subr.mxu0 0.0
    %166 = vmatpush1.msra.mxu0 0.0
    %167 = vmatprep.subr.mxu0 0.0
    %168 = vmatpush1.msra.mxu0 0.0
    %169 = vmatprep.subr.mxu0 0.0
    %170 = vmatpush1.msra.mxu0 0.0
    %171 = vmatprep.subr.mxu0 0.0
    %172 = vmatpush1.msra.mxu0 0.0
    %173 = vmatprep.subr.mxu0 0.0
    %174 = vmatpush1.msra.mxu0 0.0
    %175 = vmatprep.subr.mxu0 0.0
    %176 = vmatpush1.msra.mxu0 0.0
    %177 = vmatprep.subr.mxu0 0.0
    %178 = vmatpush1.msra.mxu0 0.0
    %179 = vmatprep.subr.mxu0 0.0
    %180 = vmatpush1.msra.mxu0 0.0
    %181 = vmatprep.subr.mxu0 0.0
    %182 = vmatpush1.msra.mxu0 0.0
    %183 = vmatprep.subr.mxu0 0.0
    %184 = vmatpush1.msra.mxu0 0.0
    %185 = vmatprep.subr.mxu0 0.0
    %186 = vmatpush1.msra.mxu0 0.0
    %187 = vmatprep.subr.mxu0 0.0
    %188 = vmatpush1.msra.mxu0 0.0
    %189 = vmatprep.subr.mxu0 0.0
    %190 = vmatpush1.msra.mxu0 0.0
    %191 = vmatprep.subr.mxu0 0.0
    %192 = vmatpush1.msra.mxu0 0.0
    %193 = vmatprep.subr.mxu0 0.0
    %194 = vmatpush1.msra.mxu0 0.0
    %195 = vmatprep.mubr.f32.mxu0 0.0
    %196 = vmatmul.mubr.f32.gmra.mrb[0].mxu0 %v129
    %v197 = vpop.f32.mrb[0].mxu0
    %v198 = vadd.f32 %v125, %v197
    %v199 = vpop.f32.mrb[0].mxu0
    %200 = vdwg.mxu0
    %v201 = vxor.u32 %v198, 2147483648
    %v202 = vmul.f32 %v201, 1.442695
    %v203 = vpow.pop %v202
    %v204 = vadd.f32 %v203, 1.0
    %v205 = vrcp.pop %v204
    %v206 = vmul.f32 1.0, %v205
    %v207 = vmul.f32 %v117, %v206
    %vm208 = vcmask 523264
    %209 = vst.msk [vmem:[#allocation13] sm:$0xff] %vm208, %v207
    // Predicated region
    $region50: #{tpu_custom_call.1} parent=1 // pred_check
      _
    $region51: #{tpu_custom_call.1} parent=1 // pred_check_branch
      %211 = sbr.rel (0) target = $region53
    $region52: #{tpu_custom_call.1} parent=1 // pred_region
      %s213 = ssub.s32 128, 128
      %214 = vsyncadd [#allocation4], %s213
      %s216 = sshll.u32 [#allocation13], 4
      %s217 = int_to_ptr.vmem [resolvable:$true] %s216
      %219 = dma.vmem_to_hbm [thread:$0]  %s217, 128, %s6, [#allocation4]
    $region53: #{tpu_custom_call.1} parent=1 // pred_fallthru
      _
    // Predicated region
    $region54: #{tpu_custom_call.1} parent=1 // pred_check
      _
    $region55: #{tpu_custom_call.1} parent=1 // pred_check_branch
      %221 = sbr.rel (0) target = $region57
    $region56: #{tpu_custom_call.1} parent=1 // pred_region
      %222 = dma.done [#allocation4], 128
    $region57: #{tpu_custom_call.1} parent=1 // pred_fallthru
      _
    %223 = vsyncpa [#allocation3], 1
    %224 = vsyncpa [#allocation8], 1
    %225 = vsyncpa [#allocation11], 1
    %226 = vsyncpa [#allocation4], 1
    %227 = vsyncpa [#allocation5], 1

</llo_original>
